<compile_context>
chip_gen: v7x
topology: tpu7x:2x2x1
jax: 0.10.0
libtpu: 0.0.40
codegen_flags: <defaults>
</compile_context>

<pallas_src>
import jax
import jax.numpy as jnp
from jax.experimental import pallas as pl
from jax.experimental.pallas import tpu as pltpu


def _drop_path_kernel(scale_ref, x_ref, o_ref):
    # scale_ref: (block_B, 1) per-row scale in x.dtype (0 or 1/keep_prob)
    # x_ref / o_ref: (block_B, block_N) tile
    o_ref[...] = x_ref[...] * scale_ref[...]


def _choose_tiles(B, N, itemsize, target_tile_bytes):
    """Pick (block_B, block_N): <=8 rows, lane-dense chunk, ~target bytes/tile."""
    # Rows per tile: full extent if small, else 8 (sublane-aligned).
    block_B = B if B <= 8 else 8
    # Lanes per tile: multiple of 128 (or full extent), sized to target bytes.
    max_lanes = max(128, target_tile_bytes // (block_B * itemsize))
    if N <= max_lanes:
        block_N = N                      # full-extent last dim is always legal
    else:
        block_N = (max_lanes // 128) * 128
    return block_B, block_N


def drop_path(x, *, drop_prob: float, key, training: bool = True,
              target_tile_bytes: int = 2 * 1024 * 1024):
    """JAX/Pallas equivalent of the PyTorch DropPath.forward."""
    if drop_prob == 0.0 or not training:
        return x
    keep_prob = 1.0 - drop_prob

    B = x.shape[0]
    N = 1
    for d in x.shape[1:]:
        N *= d
    x2 = x.reshape(B, N)                                   # (B, C*H*W) lane-dense

    # Per-sample binary mask: floor(keep_prob + U[0,1)) in {0., 1.}
    u = jax.random.uniform(key, (B,), dtype=jnp.float32)
    mask = jnp.floor(keep_prob + u)
    scale = (mask / keep_prob).astype(x.dtype).reshape(B, 1)   # (B, 1) column

    itemsize = jnp.dtype(x.dtype).itemsize
    block_B, block_N = _choose_tiles(B, N, itemsize, target_tile_bytes)
    grid = (pl.cdiv(B, block_B), pl.cdiv(N, block_N))

    out2 = pl.pallas_call(
        _drop_path_kernel,
        out_shape=jax.ShapeDtypeStruct((B, N), x.dtype),
        grid_spec=pltpu.PrefetchScalarGridSpec(
            num_scalar_prefetch=0,
            grid=grid,
            in_specs=[
                pl.BlockSpec((block_B, 1), lambda i, j: (i, 0)),        # scale
                pl.BlockSpec((block_B, block_N), lambda i, j: (i, j)),  # x
            ],
            out_specs=pl.BlockSpec((block_B, block_N), lambda i, j: (i, j)),
        ),
        compiler_params=pltpu.CompilerParams(
            dimension_semantics=("parallel", "parallel")),
    )(scale, x2)
    return out2.reshape(x.shape)


def _reference(x, drop_prob, key):
    keep_prob = 1.0 - drop_prob
    u = jax.random.uniform(key, (x.shape[0],), dtype=jnp.float32)
    mask = jnp.floor(keep_prob + u)
    bshape = (x.shape[0],) + (1,) * (x.ndim - 1)
    return x / keep_prob * mask.reshape(bshape)


if __name__ == "__main__":
    root = jax.random.PRNGKey(0)
    k_x, k_mask, k_x2, k_mask2 = jax.random.split(root, 4)
    drop_prob = 0.3

    # --- Test 1: module-sized input (B, C, H, W) = (2, 4, 16, 16) ---
    B, C, H, W = 2, 4, 16, 16
    x = jax.random.normal(k_x, (B, C, H, W), dtype=jnp.float32)

    out = drop_path(x, drop_prob=drop_prob, key=k_mask, training=True)
    out = jax.block_until_ready(out)

    ref = _reference(x, drop_prob, k_mask)
    assert out.shape == x.shape and out.dtype == x.dtype
    assert jnp.allclose(out, ref, atol=1e-6, rtol=1e-6)

    # Eval path / drop_prob == 0: identity.
    out_eval = drop_path(x, drop_prob=drop_prob, key=k_mask, training=False)
    assert jnp.array_equal(out_eval, x)
    out_zero = drop_path(x, drop_prob=0.0, key=k_mask, training=True)
    assert jnp.array_equal(out_zero, x)

    # --- Test 2: exercise multi-block grid (partial batch + lane blocks) ---
    B2, C2, H2, W2 = 9, 3, 20, 20          # N = 1200 (not a multiple of 128)
    x_big = jax.random.normal(k_x2, (B2, C2, H2, W2), dtype=jnp.float32)
    out_big = drop_path(x_big, drop_prob=drop_prob, key=k_mask2, training=True,
                        target_tile_bytes=4096)   # tiny tiles -> 2-D grid
    out_big = jax.block_until_ready(out_big)
    ref_big = _reference(x_big, drop_prob, k_mask2)
    assert jnp.allclose(out_big, ref_big, atol=1e-6, rtol=1e-6)

    print("KERNEL_OK")
</pallas_src>

<mosaic_0001>
module attributes {stable_mosaic.version = 11 : i64} {
  func.func @_drop_path_kernel(%arg0: i32, %arg1: i32, %arg2: memref<2x1xf32, #tpu.memory_space<vmem>>, %arg3: memref<2x1024xf32, #tpu.memory_space<vmem>>, %arg4: memref<2x1024xf32, #tpu.memory_space<vmem>>) attributes {dimension_semantics = [#tpu.dimension_semantics<parallel>, #tpu.dimension_semantics<parallel>], iteration_bounds = array<i64: 1, 1>, scalar_prefetch = 0 : i64, scratch_operands = 0 : i64, tpu.core_type = #tpu.core_type<tc>, window_params = [{transform_indices = @transform_0, window_bounds = array<i64: 2, 1>}, {transform_indices = @transform_1, window_bounds = array<i64: 2, 1024>}, {transform_indices = @transform_2, window_bounds = array<i64: 2, 1024>}]} {
    %c0 = arith.constant 0 : index
    %c0_0 = arith.constant 0 : index
    %0 = vector.load %arg3[%c0, %c0_0] : memref<2x1024xf32, #tpu.memory_space<vmem>>, vector<2x1024xf32>
    %c0_1 = arith.constant 0 : index
    %c0_2 = arith.constant 0 : index
    %1 = vector.load %arg2[%c0_1, %c0_2] : memref<2x1xf32, #tpu.memory_space<vmem>>, vector<2x1xf32>
    %2 = vector.broadcast %1 : vector<2x1xf32> to vector<2x1024xf32>
    %3 = arith.mulf %0, %2 : vector<2x1024xf32>
    %c0_3 = arith.constant 0 : index
    %c0_4 = arith.constant 0 : index
    %4 = vector.load %arg4[%c0_3, %c0_4] : memref<2x1024xf32, #tpu.memory_space<vmem>>, vector<2x1024xf32>
    tpu.vector_store %arg4[%c0_3, %c0_4], %3 {strides = array<i32>} : memref<2x1024xf32, #tpu.memory_space<vmem>>, vector<2x1024xf32>,
    return
  }
  func.func @transform_0(%arg0: i32, %arg1: i32) -> (i32, i32) {
    %c0_i32 = arith.constant 0 : i32
    %c0_i32_0 = arith.constant 0 : i32
    return %arg0, %c0_i32 : i32, i32
  }
  func.func @transform_1(%arg0: i32, %arg1: i32) -> (i32, i32) {
    %c0_i32 = arith.constant 0 : i32
    return %arg0, %arg1 : i32, i32
  }
  func.func @transform_2(%arg0: i32, %arg1: i32) -> (i32, i32) {
    %c0_i32 = arith.constant 0 : i32
    return %arg0, %arg1 : i32, i32
  }
}

</mosaic_0001>

<llo_original>
// kernel: tpu_custom_call.1
$region0: #{tpu_custom_call.1}
  #allocation0 [shape = 'u32[]', space=smem, size = 0x4, offset = 0x4, fixed_abs, tag = 'smem constant byte address 0x4 - core index']
  #allocation1 [shape = 'u32[144,128]{1,0:T(1,128)}', space=vmem, size = 0x12000, scoped, tag = 'internal scratch']
  %s0 = inlined_call_operand.vmem [shape: f32[2,1], index: 0, kind: input, shape index: {}]
  %s1 = inlined_call_operand.hbm [shape: f32[2,1024], index: 1, kind: input, shape index: {}]
  %s2 = inlined_call_operand.hbm [shape: f32[2,1024], index: 2, kind: output, shape index: {}]
  %s3 = sld [smem:[#allocation0]]
  $region22: #{tpu_custom_call.1} parent=0
    _
  %s5 = ssub.s32 1, %s3
  %s6 = scalar_select 0, %s5, %s3
  $region1: #{tpu_custom_call.1} parent=0
    #allocation2 [shape = 'u8[8192]{0}', space=vmem, size = 0x2000, scoped, tag = 'input window, operand 1, single buffered']
    #allocation3 [shape = 's32[1]{0}', space=sflag, size = 0x4, scoped, tag = 'scoped memory for tpu_custom_call.1']
    #allocation4 [shape = 's32[1]{0}', space=sflag, size = 0x4, scoped, tag = 'scoped memory for tpu_custom_call.1']
    #allocation5 [shape = 'u8[8192]{0}', space=vmem, size = 0x2000, scoped, tag = 'output window, operand 0, single buffered']
    %7 = vsyncpa [#allocation3], 0
    %8 = vsyncpa [#allocation4], 0
    // Predicated region
    $region2: #{tpu_custom_call.1} parent=1 // pred_check
      _
    $region3: #{tpu_custom_call.1} parent=1 // pred_check_branch
      %10 = sbr.rel (0) target = $region5
    $region4: #{tpu_custom_call.1} parent=1 // pred_region
      _
    $region5: #{tpu_custom_call.1} parent=1 // pred_fallthru
      _
    // Predicated region
    $region6: #{tpu_custom_call.1} parent=1 // pred_check
      _
    $region7: #{tpu_custom_call.1} parent=1 // pred_check_branch
      %12 = sbr.rel (0) target = $region9
    $region8: #{tpu_custom_call.1} parent=1 // pred_region
      %s14 = ssub.s32 256, 256
      %15 = vsyncadd [#allocation3], %s14
      %s17 = sshll.u32 [#allocation2], 4
      %s18 = int_to_ptr.vmem [resolvable:$true] %s17
      %20 = dma.hbm_to_vmem [thread:$0]  %s1, 256, %s18, [#allocation3]
    $region9: #{tpu_custom_call.1} parent=1 // pred_fallthru
      _
    // Predicated region
    $region10: #{tpu_custom_call.1} parent=1 // pred_check
      _
    $region11: #{tpu_custom_call.1} parent=1 // pred_check_branch
      %22 = sbr.rel (0) target = $region13
    $region12: #{tpu_custom_call.1} parent=1 // pred_region
      %23 = dma.done [#allocation3], 256
    $region13: #{tpu_custom_call.1} parent=1 // pred_fallthru
      _
    %v24 = vld [vmem:[#allocation2] sm:$0xff]
    %v25 = vld [vmem:[#allocation2 + $0x8] sm:$0xff]
    %v26 = vld [vmem:[%s0] sm:$0x3]
    %28 = vset.pattern.permute.xlu0 0
    %29 = vperm.xlu0 %28, %v26
    %v30 = vpop.permute.xlu0 %29
    %v32 = vunpack.c.l.s4 269488144
    %v33 = vunpack.c.0.s8 %v32
    %v34 = vlaneseq
    %v35 = vshrl.u32 %v34, 7
    %v36 = vsub.s32 %v33, %v35
    %v37 = vrot.slane %v30, %v36
    %v39 = vmul.f32 %v24, %v37
    %v40 = vmul.f32 %v25, %v37
    %41 = vst [vmem:[#allocation5] sm:$0xff] %v39
    %42 = vst [vmem:[#allocation5 + $0x8] sm:$0xff] %v40
    // Predicated region
    $region14: #{tpu_custom_call.1} parent=1 // pred_check
      _
    $region15: #{tpu_custom_call.1} parent=1 // pred_check_branch
      %44 = sbr.rel (0) target = $region17
    $region16: #{tpu_custom_call.1} parent=1 // pred_region
      %s46 = ssub.s32 256, 256
      %47 = vsyncadd [#allocation4], %s46
      %s49 = sshll.u32 [#allocation5], 4
      %s50 = int_to_ptr.vmem [resolvable:$true] %s49
      %52 = dma.vmem_to_hbm [thread:$0]  %s50, 256, %s2, [#allocation4]
    $region17: #{tpu_custom_call.1} parent=1 // pred_fallthru
      _
    // Predicated region
    $region18: #{tpu_custom_call.1} parent=1 // pred_check
      _
    $region19: #{tpu_custom_call.1} parent=1 // pred_check_branch
      %54 = sbr.rel (0) target = $region21
    $region20: #{tpu_custom_call.1} parent=1 // pred_region
      %55 = dma.done [#allocation4], 256
    $region21: #{tpu_custom_call.1} parent=1 // pred_fallthru
      _
    %56 = vsyncpa [#allocation3], 1
    %57 = vsyncpa [#allocation4], 1

</llo_original>
